<compile_context>
chip_gen: v7x
topology: tpu7x:2x2x1
jax: 0.10.0
libtpu: 0.0.40
codegen_flags: <defaults>
</compile_context>

<pallas_src>
import jax
import jax.numpy as jnp
from jax.experimental import pallas as pl
from jax.experimental.pallas import tpu as pltpu

_LANE = 128


def _csa_spatial_kernel(x_ref, chat_ref, wsp_ref, bsp_ref, o_ref):
    # x_ref:    (1, C, T)   input tile, HW on lanes
    # chat_ref: (1, C, 1)   precomputed channel attention (broadcast over lanes)
    # wsp_ref:  (C, C)      spatial 1x1 conv weight (C_out, C_in)
    # bsp_ref:  (C, 1)      spatial 1x1 conv bias
    # o_ref:    (1, C, T)   output tile
    x = x_ref[0].astype(jnp.float32)                                   # (C, T)

    # Spatial attention: 1x1 conv over channels == (C,C) @ (C,T) on the MXU.
    # TODO(synk): for very small C (< ~32) a VPU broadcast-FMA path would avoid
    # MXU under-utilization; kept as a matmul for robustness/generality.
    sp = jnp.dot(wsp_ref[...], x, preferred_element_type=jnp.float32) + bsp_ref[...]
    spat = jax.nn.sigmoid(sp)                                          # (C, T)

    chat = chat_ref[0]                                                 # (C, 1)

    # Fused combine: x*chat + x*spat == x * (chat + spat)
    o_ref[0] = (x * (chat + spat)).astype(o_ref.dtype)


def csa_module_v2(x_nchw, w_ch, b_ch, w_sp, b_sp, *, target_tile=1024):
    """x_nchw: (N, C, H, W). w_*: Conv2d 1x1 weights (C_out, C_in[,1,1]), b_*: (C,)."""
    n, c, h, w = x_nchw.shape
    hw = h * w
    out_dtype = x_nchw.dtype

    w_ch = jnp.asarray(w_ch, jnp.float32).reshape(c, c)
    b_ch = jnp.asarray(b_ch, jnp.float32).reshape(c)
    w_sp = jnp.asarray(w_sp, jnp.float32).reshape(c, c)
    b_sp = jnp.asarray(b_sp, jnp.float32).reshape(c, 1)

    # ---- channel-attention path (tiny: N*C values), computed in the wrapper ----
    # AdaptiveAvgPool2d(1) -> 1x1 conv -> ReLU -> Sigmoid.  Accumulate in f32
    # without materializing a full f32 copy of x.
    pooled = jnp.mean(x_nchw, axis=(2, 3), dtype=jnp.float32)            # (N, C)
    ch = pooled @ w_ch.T + b_ch[None, :]
    chat = jax.nn.sigmoid(jnp.maximum(ch, 0.0)).reshape(n, c, 1)         # (N, C, 1)

    # ---- spatial path + combine in the Pallas kernel (NCHW-native) ----
    x_flat = x_nchw.reshape(n, c, hw)                                    # pure reshape

    # Tile selection: keep double-buffered (x + out) blocks within ~8 MiB so we
    # fit comfortably everywhere (v7x has only 64 MiB VMEM / TC), and use a
    # lane-multiple tile so stores are unmasked except on the ragged edge.
    itemsize = jnp.dtype(out_dtype).itemsize
    vmem_block_budget = 8 * 1024 * 1024                                  # 2 bufs x (in + out)
    max_tile = vmem_block_budget // max(1, 4 * c * itemsize)
    max_tile = max(_LANE, (max_tile // _LANE) * _LANE)
    if hw <= min(max(target_tile, _LANE), max_tile):
        tile = hw                       # single block: block dim == array dim (always legal)
    else:
        tile = max(_LANE, (min(target_tile, max_tile) // _LANE) * _LANE)
    n_tiles = pl.cdiv(hw, tile)

    out = pl.pallas_call(
        _csa_spatial_kernel,
        out_shape=jax.ShapeDtypeStruct((n, c, hw), out_dtype),
        grid_spec=pl.GridSpec(
            grid=(n, n_tiles),
            in_specs=[
                pl.BlockSpec((1, c, tile), lambda b, t: (b, 0, t)),      # x tile (streamed)
                pl.BlockSpec((1, c, 1), lambda b, t: (b, 0, 0)),         # chat (per-batch)
                pl.BlockSpec((c, c), lambda b, t: (0, 0)),               # Wsp (resident)
                pl.BlockSpec((c, 1), lambda b, t: (0, 0)),               # bsp (resident)
            ],
            out_specs=pl.BlockSpec((1, c, tile), lambda b, t: (b, 0, t)),
        ),
        compiler_params=pltpu.CompilerParams(
            dimension_semantics=("parallel", "parallel"),
            vmem_limit_bytes=48 * 1024 * 1024,
        ),
    )(x_flat, chat, w_sp, b_sp)

    return out.reshape(n, c, h, w)


def _reference(x, w_ch, b_ch, w_sp, b_sp):
    # Plain-JAX reference of the PyTorch forward (NCHW).
    pooled = jnp.mean(x, axis=(2, 3))                                    # (N, C)
    ch = jnp.einsum("oc,nc->no", w_ch, pooled) + b_ch[None, :]
    chat = jax.nn.sigmoid(jnp.maximum(ch, 0.0))[:, :, None, None]        # (N, C, 1, 1)
    sp = jnp.einsum("oc,nchw->nohw", w_sp, x) + b_sp[None, :, None, None]
    spat = jax.nn.sigmoid(sp)
    return x * chat + x * spat


if __name__ == "__main__":
    key = jax.random.PRNGKey(0)
    k_x, k_wc, k_bc, k_ws, k_bs = jax.random.split(key, 5)

    N, C, H, W = 2, 4, 16, 16
    x = jax.random.normal(k_x, (N, C, H, W), dtype=jnp.float32)

    # Synthetic Conv2d(in_size, in_size, 1) parameters.
    w_ch = 0.1 * jax.random.normal(k_wc, (C, C), dtype=jnp.float32)
    b_ch = 0.1 * jax.random.normal(k_bc, (C,), dtype=jnp.float32)
    w_sp = 0.1 * jax.random.normal(k_ws, (C, C), dtype=jnp.float32)
    b_sp = 0.1 * jax.random.normal(k_bs, (C,), dtype=jnp.float32)

    out = csa_module_v2(x, w_ch, b_ch, w_sp, b_sp)
    out = jax.block_until_ready(out)

    ref = _reference(x, w_ch, b_ch, w_sp, b_sp)
    assert out.shape == (N, C, H, W)
    assert jnp.allclose(out, ref, atol=1e-5, rtol=1e-5), "mismatch vs reference"

    print("KERNEL_OK")
</pallas_src>

<mosaic_0001>
module attributes {stable_mosaic.version = 11 : i64} {
  func.func @_csa_spatial_kernel(%arg0: i32, %arg1: i32, %arg2: memref<1x4x256xf32, #tpu.memory_space<vmem>>, %arg3: memref<1x4x1xf32, #tpu.memory_space<vmem>>, %arg4: memref<4x4xf32, #tpu.memory_space<vmem>>, %arg5: memref<4x1xf32, #tpu.memory_space<vmem>>, %arg6: memref<1x4x256xf32, #tpu.memory_space<vmem>>) attributes {dimension_semantics = [#tpu.dimension_semantics<parallel>, #tpu.dimension_semantics<parallel>], iteration_bounds = array<i64: 2, 1>, scalar_prefetch = 0 : i64, scratch_operands = 0 : i64, tpu.core_type = #tpu.core_type<tc>, window_params = [{transform_indices = @transform_0, window_bounds = array<i64: 1, 4, 256>}, {transform_indices = @transform_1, window_bounds = array<i64: 1, 4, 1>}, {pipeline_mode = #tpu.pipeline_mode<synchronous>, transform_indices = @transform_2, window_bounds = array<i64: 4, 4>}, {pipeline_mode = #tpu.pipeline_mode<synchronous>, transform_indices = @transform_3, window_bounds = array<i64: 4, 1>}, {transform_indices = @transform_4, window_bounds = array<i64: 1, 4, 256>}]} {
    %c0 = arith.constant 0 : index
    %c0_0 = arith.constant 0 : index
    %c0_1 = arith.constant 0 : index
    %0 = vector.load %arg2[%c0, %c0_0, %c0_1] : memref<1x4x256xf32, #tpu.memory_space<vmem>>, vector<1x4x256xf32>
    %1 = vector.shape_cast %0 : vector<1x4x256xf32> to vector<4x256xf32>
    %c0_2 = arith.constant 0 : index
    %c0_3 = arith.constant 0 : index
    %2 = vector.load %arg4[%c0_2, %c0_3] : memref<4x4xf32, #tpu.memory_space<vmem>>, vector<4x4xf32>
    %cst = arith.constant dense<0.000000e+00> : vector<4x256xf32>
    %3 = tpu.matmul %2, %1, %cst {dimension_numbers = #tpu.dot_dimension_numbers<[1], [0], [0], [1], [0, 0, 1, 1], [], []>} : vector<4x4xf32>, vector<4x256xf32>, vector<4x256xf32> -> vector<4x256xf32>
    %c0_4 = arith.constant 0 : index
    %c0_5 = arith.constant 0 : index
    %4 = vector.load %arg5[%c0_4, %c0_5] : memref<4x1xf32, #tpu.memory_space<vmem>>, vector<4x1xf32>
    %5 = vector.broadcast %4 : vector<4x1xf32> to vector<4x256xf32>
    %6 = arith.addf %3, %5 : vector<4x256xf32>
    %7 = arith.negf %6 : vector<4x256xf32>
    %8 = math.exp %7 : vector<4x256xf32>
    %cst_6 = arith.constant 1.000000e+00 : f32
    %9 = vector.broadcast %cst_6 : f32 to vector<4x256xf32>
    %10 = arith.addf %9, %8 : vector<4x256xf32>
    %11 = arith.divf %9, %10 : vector<4x256xf32>
    %c0_7 = arith.constant 0 : index
    %c0_8 = arith.constant 0 : index
    %c0_9 = arith.constant 0 : index
    %12 = vector.load %arg3[%c0_7, %c0_8, %c0_9] : memref<1x4x1xf32, #tpu.memory_space<vmem>>, vector<1x4x1xf32>
    %13 = vector.shape_cast %12 : vector<1x4x1xf32> to vector<4x1xf32>
    %14 = vector.broadcast %13 : vector<4x1xf32> to vector<4x256xf32>
    %15 = arith.addf %14, %11 : vector<4x256xf32>
    %16 = arith.mulf %1, %15 : vector<4x256xf32>
    %c0_10 = arith.constant 0 : index
    %c0_11 = arith.constant 0 : index
    %c0_12 = arith.constant 0 : index
    %17 = vector.load %arg6[%c0_10, %c0_11, %c0_12] : memref<1x4x256xf32, #tpu.memory_space<vmem>>, vector<1x4x256xf32>
    %18 = vector.shape_cast %17 : vector<1x4x256xf32> to vector<4x256xf32>
    %19 = vector.shape_cast %16 : vector<4x256xf32> to vector<1x4x256xf32>
    tpu.vector_store %arg6[%c0_10, %c0_11, %c0_12], %19 {strides = array<i32>} : memref<1x4x256xf32, #tpu.memory_space<vmem>>, vector<1x4x256xf32>,
    return
  }
  func.func @transform_0(%arg0: i32, %arg1: i32) -> (i32, i32, i32) {
    %c0_i32 = arith.constant 0 : i32
    %c0_i32_0 = arith.constant 0 : i32
    return %arg0, %c0_i32, %arg1 : i32, i32, i32
  }
  func.func @transform_1(%arg0: i32, %arg1: i32) -> (i32, i32, i32) {
    %c0_i32 = arith.constant 0 : i32
    %c0_i32_0 = arith.constant 0 : i32
    %c0_i32_1 = arith.constant 0 : i32
    return %arg0, %c0_i32, %c0_i32_0 : i32, i32, i32
  }
  func.func @transform_2(%arg0: i32, %arg1: i32) -> (i32, i32) {
    %c0_i32 = arith.constant 0 : i32
    %c0_i32_0 = arith.constant 0 : i32
    %c0_i32_1 = arith.constant 0 : i32
    return %c0_i32, %c0_i32_0 : i32, i32
  }
  func.func @transform_3(%arg0: i32, %arg1: i32) -> (i32, i32) {
    %c0_i32 = arith.constant 0 : i32
    %c0_i32_0 = arith.constant 0 : i32
    %c0_i32_1 = arith.constant 0 : i32
    return %c0_i32, %c0_i32_0 : i32, i32
  }
  func.func @transform_4(%arg0: i32, %arg1: i32) -> (i32, i32, i32) {
    %c0_i32 = arith.constant 0 : i32
    %c0_i32_0 = arith.constant 0 : i32
    return %arg0, %c0_i32, %arg1 : i32, i32, i32
  }
}

</mosaic_0001>

<llo_original>
// kernel: tpu_custom_call.1
$region0: #{tpu_custom_call.1}
  #allocation0 [shape = 'u32[]', space=smem, size = 0x4, offset = 0x4, fixed_abs, tag = 'smem constant byte address 0x4 - core index']
  #allocation1 [shape = 'u32[144,128]{1,0:T(1,128)}', space=vmem, size = 0x12000, scoped, tag = 'internal scratch']
  %s0 = inlined_call_operand.hbm [shape: f32[2,4,256], index: 0, kind: input, shape index: {}]
  %s1 = inlined_call_operand.vmem [shape: f32[2,4,1], index: 1, kind: input, shape index: {}]
  %s2 = inlined_call_operand.vmem [shape: f32[4,4], index: 2, kind: input, shape index: {}]
  %s3 = inlined_call_operand.vmem [shape: f32[4,1], index: 3, kind: input, shape index: {}]
  %s4 = inlined_call_operand.hbm [shape: f32[2,4,256], index: 4, kind: output, shape index: {}]
  %s5 = sld [smem:[#allocation0]]
  $region53: #{tpu_custom_call.1} parent=0
    _
  %s7 = ssub.s32 1, %s5
  %s8 = scalar_select 0, %s7, %s5
  $region1: #{tpu_custom_call.1} parent=0
    #allocation2 [shape = 'u8[8192]{0}', space=vmem, size = 0x2000, scoped, tag = 'input window, operand 0']
    #allocation3 [shape = 's32[2]{0}', space=sflag, size = 0x8, scoped, tag = 'scoped memory for tpu_custom_call.1']
    #allocation4 [shape = 's32[2]{0}', space=sflag, size = 0x8, scoped, tag = 'scoped memory for tpu_custom_call.1']
    #allocation5 [shape = 'u8[8192]{0}', space=vmem, size = 0x2000, scoped, tag = 'output window, operand 0']
    %9 = vsyncpa [#allocation3], 0
    %s10 = scalar_lea.sflag [#allocation3], 1
    %11 = vsyncpa %s10, 0
    %12 = vsyncpa [#allocation4], 0
    %s13 = scalar_lea.sflag [#allocation4], 1
    %14 = vsyncpa %s13, 0
    loop: start=0, step=1, limit=4
    $region2: #{tpu_custom_call.1} parent=1 // loop_pre_header
      _
    $region3: #{tpu_custom_call.1} parent=1 // loop_header
      %s16 = sphi 0, %s20
      %p17 = scmp.ge.s32.totalorder %s16, 4
      %s23 = sphi 0, %s35
      %s24 = sphi 0, %s31
      %s25 = sphi 0, %s23
      %s26 = sphi 0, %s24
      %s27 = sphi 0, %s25
      %s28 = sphi 0, %s26
      %s40 = sphi 0, %s42
      %s43 = sphi 0, %s40
      %s44 = sphi 0, %s43
      %s60 = sphi 0, %s44
      %s66 = sphi 0, %s68
      %s69 = sphi 0, %s66
      %s70 = sphi 0, %s69
      %s86 = sphi 0, %s70
      %s90 = sphi 0, %s90
      %s92 = sphi 0, %s90
      %s93 = sphi 0, %s92
      %s107 = sphi 0, %s93
      %s111 = sphi 0, %s111
      %s113 = sphi 0, %s111
      %s114 = sphi 0, %s113
      %s128 = sphi 0, %s114
      %s136 = sphi 0, %s138
      %s139 = sphi 0, %s136
      %s140 = sphi 0, %s139
      %s156 = sphi 0, %s140
    $region4: #{tpu_custom_call.1} parent=1 // loop_header_branch
      %19 = sbr.rel (%p17) target = $region8
    $region5: #{tpu_custom_call.1} parent=1 // loop_body
      %s21 = ssub.s32 %s16, 1
      %s22 = ssub.s32 %s16, 2
      %s29 = sadd.s32 1, %s24
      %p30 = scmp.ge.s32.totalorder %s29, 1
      %s31 = scalar_select %p30, 0, %s29
      %s32 = sadd.s32 1, %s23
      %s33 = scalar_select %p30, %s32, %s23
      %p34 = scmp.ge.s32.totalorder %s33, 2
      %s35 = scalar_select %p34, 0, %s33
      %s36 = ssub.s32 %s23, %s35
      %s37 = ssub.s32 %s24, %s31
      %s38 = sor.u32 %s36, %s37
      %p39 = scmp.eq.s32.totalorder %s38, 0
      %s41 = sadd.s32 %s40, 1
      %s42 = scalar_select %p39, %s40, %s41
      %p45 = pneg %p39
      %p46 = scmp.eq.s32.totalorder %s16, 1
      %p47 = por %p45, %p46
      %p48 = scmp.ne.s32.totalorder %s40, %s43
      %p49 = scmp.eq.s32.totalorder %s16, 0
      %p50 = por %p48, %p49
      %p51 = scmp.ne.s32.totalorder %s40, %s43
      %p52 = scmp.eq.s32.totalorder %s21, 1
      %p53 = por %p51, %p52
      %p54 = scmp.ne.s32.totalorder %s43, %s44
      %p55 = scmp.eq.s32.totalorder %s21, 0
      %p56 = por %p54, %p55
      %p57 = scmp.ne.s32.totalorder %s43, %s44
      %p58 = scmp.eq.s32.totalorder %s22, 1
      %p59 = por %p57, %p58
      %p61 = scmp.ne.s32.totalorder %s44, %s60
      %p62 = scmp.eq.s32.totalorder %s22, 0
      %p63 = por %p61, %p62
      %s64 = ssub.s32 %s23, %s35
      %p65 = scmp.eq.s32.totalorder %s64, 0
      %s67 = sadd.s32 %s66, 1
      %s68 = scalar_select %p65, %s66, %s67
      %p71 = pneg %p65
      %p72 = scmp.eq.s32.totalorder %s16, 1
      %p73 = por %p71, %p72
      %p74 = scmp.ne.s32.totalorder %s66, %s69
      %p75 = scmp.eq.s32.totalorder %s16, 0
      %p76 = por %p74, %p75
      %p77 = scmp.ne.s32.totalorder %s66, %s69
      %p78 = scmp.eq.s32.totalorder %s21, 1
      %p79 = por %p77, %p78
      %p80 = scmp.ne.s32.totalorder %s69, %s70
      %p81 = scmp.eq.s32.totalorder %s21, 0
      %p82 = por %p80, %p81
      %p83 = scmp.ne.s32.totalorder %s69, %s70
      %p84 = scmp.eq.s32.totalorder %s22, 1
      %p85 = por %p83, %p84
      %p87 = scmp.ne.s32.totalorder %s70, %s86
      %p88 = scmp.eq.s32.totalorder %s22, 0
      %p89 = por %p87, %p88
      %s91 = sadd.s32 %s90, 1
      %p94 = scmp.eq.s32.totalorder %s16, 1
      %p95 = scmp.ne.s32.totalorder %s90, %s92
      %p96 = scmp.eq.s32.totalorder %s16, 0
      %p97 = por %p95, %p96
      %p98 = scmp.ne.s32.totalorder %s90, %s92
      %p99 = scmp.eq.s32.totalorder %s21, 1
      %p100 = por %p98, %p99
      %p101 = scmp.ne.s32.totalorder %s92, %s93
      %p102 = scmp.eq.s32.totalorder %s21, 0
      %p103 = por %p101, %p102
      %p104 = scmp.ne.s32.totalorder %s92, %s93
      %p105 = scmp.eq.s32.totalorder %s22, 1
      %p106 = por %p104, %p105
      %p108 = scmp.ne.s32.totalorder %s93, %s107
      %p109 = scmp.eq.s32.totalorder %s22, 0
      %p110 = por %p108, %p109
      %s112 = sadd.s32 %s111, 1
      %p115 = scmp.eq.s32.totalorder %s16, 1
      %p116 = scmp.ne.s32.totalorder %s111, %s113
      %p117 = scmp.eq.s32.totalorder %s16, 0
      %p118 = por %p116, %p117
      %p119 = scmp.ne.s32.totalorder %s111, %s113
      %p120 = scmp.eq.s32.totalorder %s21, 1
      %p121 = por %p119, %p120
      %p122 = scmp.ne.s32.totalorder %s113, %s114
      %p123 = scmp.eq.s32.totalorder %s21, 0
      %p124 = por %p122, %p123
      %p125 = scmp.ne.s32.totalorder %s113, %s114
      %p126 = scmp.eq.s32.totalorder %s22, 1
      %p127 = por %p125, %p126
      %p129 = scmp.ne.s32.totalorder %s114, %s128
      %p130 = scmp.eq.s32.totalorder %s22, 0
      %p131 = por %p129, %p130
      %s132 = ssub.s32 %s23, %s35
      %s133 = ssub.s32 %s24, %s31
      %s134 = sor.u32 %s132, %s133
      %p135 = scmp.eq.s32.totalorder %s134, 0
      %s137 = sadd.s32 %s136, 1
      %s138 = scalar_select %p135, %s136, %s137
      %p141 = pneg %p135
      %p142 = scmp.eq.s32.totalorder %s16, 1
      %p143 = por %p141, %p142
      %p144 = scmp.ne.s32.totalorder %s136, %s139
      %p145 = scmp.eq.s32.totalorder %s16, 0
      %p146 = por %p144, %p145
      %p147 = scmp.ne.s32.totalorder %s136, %s139
      %p148 = scmp.eq.s32.totalorder %s21, 1
      %p149 = por %p147, %p148
      %p150 = scmp.ne.s32.totalorder %s139, %s140
      %p151 = scmp.eq.s32.totalorder %s21, 0
      %p152 = por %p150, %p151
      %p153 = scmp.ne.s32.totalorder %s139, %s140
      %p154 = scmp.eq.s32.totalorder %s22, 1
      %p155 = por %p153, %p154
      %p157 = scmp.ne.s32.totalorder %s140, %s156
      %p158 = scmp.eq.s32.totalorder %s22, 0
      %p159 = por %p157, %p158
      %p160 = scmp.le.s32.totalorder 1, %s16
      %p161 = scmp.lt.s32.totalorder %s16, 3
      %p162 = pnand %p160, %p161
      %p163 = pneg %p162
      // Predicated region
      $region9: #{tpu_custom_call.1} parent=5 // pred_check
        _
      $region10: #{tpu_custom_call.1} parent=5 // pred_check_branch
        %165 = sbr.rel (%p162) target = $region12
      $region11: #{tpu_custom_call.1} parent=5 // pred_region
        %s166 = ssub.s32 %s16, 1
        // Predicated region
        $region13: #{tpu_custom_call.1} parent=11 // pred_check
          %p167 = pneg %p103
        $region14: #{tpu_custom_call.1} parent=11 // pred_check_branch
          %169 = sbr.rel (%p167) target = $region16
        $region15: #{tpu_custom_call.1} parent=11 // pred_region
          _
        $region16: #{tpu_custom_call.1} parent=11 // pred_fallthru
          _
        // Predicated region
        $region17: #{tpu_custom_call.1} parent=11 // pred_check
          %p170 = pneg %p124
        $region18: #{tpu_custom_call.1} parent=11 // pred_check_branch
          %172 = sbr.rel (%p170) target = $region20
        $region19: #{tpu_custom_call.1} parent=11 // pred_region
          _
        $region20: #{tpu_custom_call.1} parent=11 // pred_fallthru
          _
      $region12: #{tpu_custom_call.1} parent=5 // pred_fallthru
        _
      %p173 = scmp.lt.s32.totalorder %s16, 2
      // Predicated region
      $region21: #{tpu_custom_call.1} parent=5 // pred_check
        %p174 = pneg %p173
      $region22: #{tpu_custom_call.1} parent=5 // pred_check_branch
        %176 = sbr.rel (%p174) target = $region24
      $region23: #{tpu_custom_call.1} parent=5 // pred_region
        // Predicated region
        $region25: #{tpu_custom_call.1} parent=23 // pred_check
          %p177 = pneg %p50
        $region26: #{tpu_custom_call.1} parent=23 // pred_check_branch
          %179 = sbr.rel (%p177) target = $region28
        $region27: #{tpu_custom_call.1} parent=23 // pred_region
          %s180 = sand.u32 %s40, 1
          %s181 = scalar_lea.sflag [#allocation3], %s180
          %s182 = sand.u32 %s40, 1
          %s183 = smul.addr %s182, 8
          %s184 = scalar_lea.vmem [#allocation2], %s183
          %s185 = smul.u32 2, %s24
          %s187 = ssub.s32 128, 128
          %188 = vsyncadd %s181, %s187
          %s189 = smul.addr %s23, 2
          %s190 = sadd.s32 %s185, %s189
          %s191 = smul.addr %s190, 64
          %s192 = scalar_lea.hbm %s0, %s191
          %s194 = sshll.u32 %s184, 4
          %s195 = int_to_ptr.vmem [resolvable:$true] %s194
          %197 = dma.hbm_to_vmem [thread:$0]  %s192, 128, %s195, %s181
        $region28: #{tpu_custom_call.1} parent=23 // pred_fallthru
          _
        // Predicated region
        $region29: #{tpu_custom_call.1} parent=23 // pred_check
          %p198 = pneg %p76
        $region30: #{tpu_custom_call.1} parent=23 // pred_check_branch
          %200 = sbr.rel (%p198) target = $region32
        $region31: #{tpu_custom_call.1} parent=23 // pred_region
          %p201 = scmp.lt.s32.totalorder %s23, 1
          %s202 = scalar_select %p201, %s23, 1
          %s203 = smul.addr %s202, 4
          %s204 = scalar_lea.vmem %s1, %s203
        $region32: #{tpu_custom_call.1} parent=23 // pred_fallthru
          _
      $region24: #{tpu_custom_call.1} parent=5 // pred_fallthru
        _
      %p205 = scmp.le.s32.totalorder 1, %s16
      %p206 = scmp.lt.s32.totalorder %s16, 3
      %p207 = pnand %p205, %p206
      %p208 = pneg %p207
      // Predicated region
      $region33: #{tpu_custom_call.1} parent=5 // pred_check
        _
      $region34: #{tpu_custom_call.1} parent=5 // pred_check_branch
        %210 = sbr.rel (%p207) target = $region36
      $region35: #{tpu_custom_call.1} parent=5 // pred_region
        %s211 = ssub.s32 %s16, 1
        %s212 = sand.u32 %s43, 1
        %s213 = scalar_lea.sflag [#allocation3], %s212
        %s214 = sand.u32 %s43, 1
        %s215 = smul.addr %s214, 8
        %s216 = scalar_lea.vmem [#allocation2], %s215
        // Predicated region
        $region37: #{tpu_custom_call.1} parent=35 // pred_check
          %p217 = pneg %p56
        $region38: #{tpu_custom_call.1} parent=35 // pred_check_branch
          %219 = sbr.rel (%p217) target = $region40
        $region39: #{tpu_custom_call.1} parent=35 // pred_region
          %220 = dma.done %s213, 128
        $region40: #{tpu_custom_call.1} parent=35 // pred_fallthru
          _
        %s221 = sand.u32 %s43, 1
        %s222 = scalar_lea.sflag [#allocation3], %s221
        %s223 = sand.u32 %s43, 1
        %s224 = smul.addr %s223, 8
        %s225 = scalar_lea.vmem [#allocation2], %s224
        %p226 = pneg %p56
        %p227 = pneg %p53
        %p228 = scmp.lt.s32.totalorder %s25, 1
        %s229 = scalar_select %p228, %s25, 1
        %s230 = smul.addr %s229, 4
        %s231 = scalar_lea.vmem %s1, %s230
        %p232 = pneg %p82
        %p233 = pneg %p79
        %p234 = pneg %p103
        %p235 = pneg %p100
        %p236 = pneg %p124
        %p237 = pneg %p121
        %p238 = pneg %p152
        %p239 = pneg %p149
        %s240 = sand.u32 %s139, 1
        %s241 = scalar_lea.sflag [#allocation4], %s240
        %s242 = sand.u32 %s139, 1
        %s243 = smul.addr %s242, 8
        %s244 = scalar_lea.vmem [#allocation5], %s243
        %s245 = smul.u32 2, %s26
        %p246 = scmp.lt.s32.totalorder %s25, 1
        %s247 = scalar_select %p246, %s25, 1
        %s248 = smul.addr %s247, 4
        %s249 = scalar_lea.vmem %s1, %s248
        %s250 = smul.u32 2, %s26
        %v251 = vld [vmem:[%s216] sm:$0xff]
        %v252 = vld [vmem:[%s2] sm:$0xf]
        %v253 = vld [vmem:[%s3] sm:$0xf]
        %255 = vset.pattern.permute.xlu0 0
        %256 = vperm.xlu0 %255, %v253
        %v257 = vpop.permute.xlu0 %256
        %v260 = vcombine.high %v251, %v251
        %vm261 = vcmask 31744
        %v263 = vsel %vm261, %v252, 0
        %vm265 = vcmask 1043456
        %v266 = vsel %vm265, %v251, 0
        %v268 = vsel %vm265, %v260, 0
        %270 = vmatprep.subr.mxu0 %v268
        %271 = vmatpush1.msra.mxu0 %v266
        %272 = vmatprep.subr.mxu0 0.0
        %273 = vmatpush1.msra.mxu0 0.0
        %274 = vmatprep.subr.mxu0 0.0
        %275 = vmatpush1.msra.mxu0 0.0
        %276 = vmatprep.subr.mxu0 0.0
        %277 = vmatpush1.msra.mxu0 0.0
        %278 = vmatprep.subr.mxu0 0.0
        %279 = vmatpush1.msra.mxu0 0.0
        %280 = vmatprep.subr.mxu0 0.0
        %281 = vmatpush1.msra.mxu0 0.0
        %282 = vmatprep.subr.mxu0 0.0
        %283 = vmatpush1.msra.mxu0 0.0
        %284 = vmatprep.subr.mxu0 0.0
        %285 = vmatpush1.msra.mxu0 0.0
        %286 = vmatprep.subr.mxu0 0.0
        %287 = vmatpush1.msra.mxu0 0.0
        %288 = vmatprep.subr.mxu0 0.0
        %289 = vmatpush1.msra.mxu0 0.0
        %290 = vmatprep.subr.mxu0 0.0
        %291 = vmatpush1.msra.mxu0 0.0
        %292 = vmatprep.subr.mxu0 0.0
        %293 = vmatpush1.msra.mxu0 0.0
        %294 = vmatprep.subr.mxu0 0.0
        %295 = vmatpush1.msra.mxu0 0.0
        %296 = vmatprep.subr.mxu0 0.0
        %297 = vmatpush1.msra.mxu0 0.0
        %298 = vmatprep.subr.mxu0 0.0
        %299 = vmatpush1.msra.mxu0 0.0
        %300 = vmatprep.subr.mxu0 0.0
        %301 = vmatpush1.msra.mxu0 0.0
        %302 = vmatprep.subr.mxu0 0.0
        %303 = vmatpush1.msra.mxu0 0.0
        %304 = vmatprep.subr.mxu0 0.0
        %305 = vmatpush1.msra.mxu0 0.0
        %306 = vmatprep.subr.mxu0 0.0
        %307 = vmatpush1.msra.mxu0 0.0
        %308 = vmatprep.subr.mxu0 0.0
        %309 = vmatpush1.msra.mxu0 0.0
        %310 = vmatprep.subr.mxu0 0.0
        %311 = vmatpush1.msra.mxu0 0.0
        %312 = vmatprep.subr.mxu0 0.0
        %313 = vmatpush1.msra.mxu0 0.0
        %314 = vmatprep.subr.mxu0 0.0
        %315 = vmatpush1.msra.mxu0 0.0
        %316 = vmatprep.subr.mxu0 0.0
        %317 = vmatpush1.msra.mxu0 0.0
        %318 = vmatprep.subr.mxu0 0.0
        %319 = vmatpush1.msra.mxu0 0.0
        %320 = vmatprep.subr.mxu0 0.0
        %321 = vmatpush1.msra.mxu0 0.0
        %322 = vmatprep.subr.mxu0 0.0
        %323 = vmatpush1.msra.mxu0 0.0
        %324 = vmatprep.subr.mxu0 0.0
        %325 = vmatpush1.msra.mxu0 0.0
        %326 = vmatprep.subr.mxu0 0.0
        %327 = vmatpush1.msra.mxu0 0.0
        %328 = vmatprep.subr.mxu0 0.0
        %329 = vmatpush1.msra.mxu0 0.0
        %330 = vmatprep.subr.mxu0 0.0
        %331 = vmatpush1.msra.mxu0 0.0
        %332 = vmatprep.subr.mxu0 0.0
        %333 = vmatpush1.msra.mxu0 0.0
        %334 = vmatprep.mubr.f32.mxu0 0.0
        %335 = vmatmul.mubr.f32.gmra.mrb[0].mxu0 %v263
        %v336 = vpop.f32.mrb[0].mxu0
        %v337 = vadd.f32 %v257, %v336
        %v338 = vpop.f32.mrb[0].mxu0
        %v339 = vadd.f32 %v257, %v338
        %340 = vdwg.mxu0
        %v341 = vxor.u32 %v337, 2147483648
        %v342 = vxor.u32 %v339, 2147483648
        %v343 = vmul.f32 %v341, 1.442695
        %v344 = vpow.pop %v343
        %v345 = vmul.f32 %v342, 1.442695
        %v346 = vpow.pop %v345
        %v347 = vadd.f32 %v344, 1.0
        %v348 = vadd.f32 %v346, 1.0
        %v349 = vrcp.pop %v347
        %v350 = vmul.f32 1.0, %v349
        %v351 = vrcp.pop %v348
        %v352 = vmul.f32 1.0, %v351
        %v353 = vld [vmem:[%s249] sm:$0xf]
        %355 = vset.pattern.permute.xlu0 0
        %356 = vperm.xlu0 %355, %v353
        %v357 = vpop.permute.xlu0 %356
        %v359 = vadd.f32 %v357, %v350
        %v360 = vadd.f32 %v357, %v352
        %v363 = vcombine.low %v359, %v360
        %v365 = vmul.f32 %v251, %v363
        %366 = vst [vmem:[%s244] sm:$0xff] %v365
        %s367 = sand.u32 %s139, 1
        %s368 = scalar_lea.sflag [#allocation4], %s367
        %s369 = sand.u32 %s139, 1
        %s370 = smul.addr %s369, 8
        %s371 = scalar_lea.vmem [#allocation5], %s370
        // Predicated region
        $region41: #{tpu_custom_call.1} parent=35 // pred_check
          %p372 = pneg %p149
        $region42: #{tpu_custom_call.1} parent=35 // pred_check_branch
          %374 = sbr.rel (%p372) target = $region44
        $region43: #{tpu_custom_call.1} parent=35 // pred_region
          %s375 = smul.u32 2, %s26
          %s377 = ssub.s32 128, 128
          %378 = vsyncadd %s368, %s377
          %s379 = smul.addr %s25, 2
          %s380 = sadd.s32 %s375, %s379
          %s381 = smul.addr %s380, 64
          %s382 = scalar_lea.hbm %s4, %s381
          %s384 = sshll.u32 %s371, 4
          %s385 = int_to_ptr.vmem [resolvable:$true] %s384
          %387 = dma.vmem_to_hbm [thread:$0]  %s385, 128, %s382, %s368
        $region44: #{tpu_custom_call.1} parent=35 // pred_fallthru
          _
      $region36: #{tpu_custom_call.1} parent=5 // pred_fallthru
        _
      %p388 = scmp.le.s32.totalorder 2, %s16
      // Predicated region
      $region45: #{tpu_custom_call.1} parent=5 // pred_check
        %p389 = pneg %p388
      $region46: #{tpu_custom_call.1} parent=5 // pred_check_branch
        %391 = sbr.rel (%p389) target = $region48
      $region47: #{tpu_custom_call.1} parent=5 // pred_region
        %s392 = ssub.s32 %s16, 2
        // Predicated region
        $region49: #{tpu_custom_call.1} parent=47 // pred_check
          %p393 = pneg %p155
        $region50: #{tpu_custom_call.1} parent=47 // pred_check_branch
          %395 = sbr.rel (%p393) target = $region52
        $region51: #{tpu_custom_call.1} parent=47 // pred_region
          %s396 = sand.u32 %s140, 1
          %s397 = scalar_lea.sflag [#allocation4], %s396
          %s398 = sand.u32 %s140, 1
          %s399 = smul.addr %s398, 8
          %s400 = scalar_lea.vmem [#allocation5], %s399
          %401 = dma.done %s397, 128
        $region52: #{tpu_custom_call.1} parent=47 // pred_fallthru
          _
      $region48: #{tpu_custom_call.1} parent=5 // pred_fallthru
        _
    $region6: #{tpu_custom_call.1} parent=1 // loop_footer
      %s20 = sadd.s32 1, %s16
    $region7: #{tpu_custom_call.1} parent=1 // loop_footer_branch
      %15 = sbr.rel target = $region3
    $region8: #{tpu_custom_call.1} parent=1 // loop_exit
      _
    %402 = vsyncpa [#allocation3], 1
    %s403 = scalar_lea.sflag [#allocation3], 1
    %404 = vsyncpa %s403, 1
    %405 = vsyncpa [#allocation4], 1
    %s406 = scalar_lea.sflag [#allocation4], 1
    %407 = vsyncpa %s406, 1

</llo_original>
